<compile_context>
chip_gen: v7x
topology: tpu7x:2x2x1
jax: 0.10.0
libtpu: 0.0.40
codegen_flags: <defaults>
</compile_context>

<pallas_src>
import jax
import jax.numpy as jnp
from jax import lax
from jax.experimental import pallas as pl
from jax.experimental.pallas import tpu as pltpu


def _attn_core_kernel(xq_ref, x_ref, wq_ref, bq_ref, wkv_ref, bkv_ref, o_ref):
    hd = wq_ref.shape[0]

    x = x_ref[...]           # (C, N)   f32, lane-dense on N (full key/value context)
    xq = xq_ref[...]         # (C, TQ)  f32, current query row block

    # Fused K/V projection: a 1x1x1 Conv3d is a per-position channel matmul.
    kv = jnp.dot(wkv_ref[...], x, preferred_element_type=jnp.float32) + bkv_ref[...]  # (2hd, N)
    k = kv[:hd, :]           # (hd, N)
    v = kv[hd:, :]           # (C,  N)

    # Q projection for this row block only.
    q = jnp.dot(wq_ref[...], xq, preferred_element_type=jnp.float32) + bq_ref[...]    # (hd, TQ)

    # Scores S = Q^T K for this block: (TQ, N). bf16 MXU operands, f32 accumulate.
    s = jnp.dot(jnp.transpose(q).astype(jnp.bfloat16),
                k.astype(jnp.bfloat16),
                preferred_element_type=jnp.float32)

    # Numerically-stable softmax over the last axis, in f32 (matches torch dim=-1).
    s_max = jnp.max(s, axis=-1, keepdims=True)
    p = jnp.exp(s - s_max)
    denom = jnp.sum(p, axis=-1, keepdims=True)
    a = p * pl.reciprocal(denom, approx=True)          # (TQ, N)

    # Z^T row block: (C, TQ) = V @ A^T  -> lane-dense store on the position axis.
    z = lax.dot_general(v.astype(jnp.bfloat16), a.astype(jnp.bfloat16),
                        dimension_numbers=(((1,), (1,)), ((), ())),
                        preferred_element_type=jnp.float32)
    o_ref[...] = z.astype(o_ref.dtype)


@jax.jit
def sa_attn_core_forward(h, wq, bq, wk, bk, wv, bv):
    """h: (B, C, T, H, W) float32 (PyTorch NCTHW convention)."""
    B, C, T, H, W = h.shape
    hd = wq.shape[0]
    assert hd == C, "forward requires hidden_dim == input_dim"
    N = T * H * W
    TQ = 128 if N % 128 == 0 else N          # q-row block (lane-dense output tiles)
    nQ = N // TQ

    x = h.reshape(B, C, N)                   # free reshape, native layout (no transpose)

    # Pack K/V weights & biases for the fused projection; biases as columns (hd, 1)
    # so they broadcast across the lane (position) axis in-kernel.
    wkv = jnp.concatenate([wk, wv], axis=0)                    # (2*hd, C)
    bkv = jnp.concatenate([bk, bv], axis=0).reshape(2 * hd, 1)
    bq2 = bq.reshape(hd, 1)

    out = pl.pallas_call(
        _attn_core_kernel,
        out_shape=jax.ShapeDtypeStruct((B, C, N), h.dtype),
        grid_spec=pltpu.PrefetchScalarGridSpec(
            num_scalar_prefetch=0,
            grid=(B, nQ),
            in_specs=[
                pl.BlockSpec((None, C, TQ), lambda b, qi: (b, 0, qi)),  # x, q row-block view
                pl.BlockSpec((None, C, N), lambda b, qi: (b, 0, 0)),    # x, full view (K/V)
                pl.BlockSpec((hd, C), lambda b, qi: (0, 0)),            # Wq
                pl.BlockSpec((hd, 1), lambda b, qi: (0, 0)),            # bq
                pl.BlockSpec((2 * hd, C), lambda b, qi: (0, 0)),        # [Wk; Wv]
                pl.BlockSpec((2 * hd, 1), lambda b, qi: (0, 0)),        # [bk; bv]
            ],
            out_specs=pl.BlockSpec((None, C, TQ), lambda b, qi: (b, 0, qi)),
        ),
        compiler_params=pltpu.CompilerParams(
            dimension_semantics=("parallel", "parallel")),
    )(x, x, wq, bq2, wkv, bkv)

    return out.reshape(B, C, T, H, W)


def _reference_forward(h, wq, bq, wk, bk, wv, bv):
    """Pure-JAX reference mirroring the PyTorch attention-core forward."""
    B, C, T, H, W = h.shape
    N = T * H * W
    x = h.reshape(B, C, N)                                         # (B, C, N)
    K_h = jnp.einsum("oc,bcn->bon", wk, x) + bk[None, :, None]     # (B, hd, N)
    Q_h = jnp.einsum("oc,bcn->bon", wq, x) + bq[None, :, None]     # (B, hd, N)
    V_h = jnp.einsum("oc,bcn->bon", wv, x) + bv[None, :, None]     # (B, C, N)
    Qt = jnp.transpose(Q_h, (0, 2, 1))                             # (B, N, hd)
    A = jax.nn.softmax(jnp.einsum("bnh,bhm->bnm", Qt, K_h), axis=-1)
    Z = jnp.einsum("bnm,bmc->bnc", A, jnp.transpose(V_h, (0, 2, 1)))
    return jnp.transpose(Z, (0, 2, 1)).reshape(B, C, T, H, W)


if __name__ == "__main__":
    # Small shapes consistent with the module: input_dim == hidden_dim == 8.
    B, C, T, H, W = 2, 8, 4, 8, 8
    hidden_dim = C

    key = jax.random.PRNGKey(0)
    kx, kq, kbq, kk, kbk, kv, kbv = jax.random.split(key, 7)

    h = jax.random.normal(kx, (B, C, T, H, W), dtype=jnp.float32)

    # Conv3d(C, hd, kernel (1,1,1)) weights reduce to (hd, C) matrices + (hd,) biases.
    scale = 0.1
    wq = scale * jax.random.normal(kq, (hidden_dim, C), dtype=jnp.float32)
    bq = scale * jax.random.normal(kbq, (hidden_dim,), dtype=jnp.float32)
    wk = scale * jax.random.normal(kk, (hidden_dim, C), dtype=jnp.float32)
    bk = scale * jax.random.normal(kbk, (hidden_dim,), dtype=jnp.float32)
    wv = scale * jax.random.normal(kv, (hidden_dim, C), dtype=jnp.float32)
    bv = scale * jax.random.normal(kbv, (hidden_dim,), dtype=jnp.float32)

    out = sa_attn_core_forward(h, wq, bq, wk, bk, wv, bv)
    out = jax.block_until_ready(out)

    ref = _reference_forward(h, wq, bq, wk, bk, wv, bv)
    assert out.shape == (B, C, T, H, W)
    assert jnp.allclose(out, ref, atol=1e-2, rtol=1e-2), "mismatch vs JAX reference"

    print("KERNEL_OK")
</pallas_src>

<mosaic_0001>
module attributes {stable_mosaic.version = 11 : i64} {
  func.func @_attn_core_kernel(%arg0: i32, %arg1: i32, %arg2: memref<1x8x128xf32, #tpu.memory_space<vmem>>, %arg3: memref<1x8x256xf32, #tpu.memory_space<vmem>>, %arg4: memref<8x8xf32, #tpu.memory_space<vmem>>, %arg5: memref<8x1xf32, #tpu.memory_space<vmem>>, %arg6: memref<16x8xf32, #tpu.memory_space<vmem>>, %arg7: memref<16x1xf32, #tpu.memory_space<vmem>>, %arg8: memref<1x8x128xf32, #tpu.memory_space<vmem>>) attributes {dimension_semantics = [#tpu.dimension_semantics<parallel>, #tpu.dimension_semantics<parallel>], iteration_bounds = array<i64: 2, 2>, scalar_prefetch = 0 : i64, scratch_operands = 0 : i64, tpu.core_type = #tpu.core_type<tc>, window_params = [{transform_indices = @transform_0, window_bounds = array<i64: 1, 8, 128>}, {transform_indices = @transform_1, window_bounds = array<i64: 1, 8, 256>}, {pipeline_mode = #tpu.pipeline_mode<synchronous>, transform_indices = @transform_2, window_bounds = array<i64: 8, 8>}, {pipeline_mode = #tpu.pipeline_mode<synchronous>, transform_indices = @transform_3, window_bounds = array<i64: 8, 1>}, {pipeline_mode = #tpu.pipeline_mode<synchronous>, transform_indices = @transform_4, window_bounds = array<i64: 16, 8>}, {pipeline_mode = #tpu.pipeline_mode<synchronous>, transform_indices = @transform_5, window_bounds = array<i64: 16, 1>}, {transform_indices = @transform_6, window_bounds = array<i64: 1, 8, 128>}]} {
    %c0 = arith.constant 0 : index
    %c0_0 = arith.constant 0 : index
    %c0_1 = arith.constant 0 : index
    %0 = vector.load %arg3[%c0, %c0_0, %c0_1] : memref<1x8x256xf32, #tpu.memory_space<vmem>>, vector<1x8x256xf32>
    %1 = vector.shape_cast %0 : vector<1x8x256xf32> to vector<8x256xf32>
    %c0_2 = arith.constant 0 : index
    %c0_3 = arith.constant 0 : index
    %c0_4 = arith.constant 0 : index
    %2 = vector.load %arg2[%c0_2, %c0_3, %c0_4] : memref<1x8x128xf32, #tpu.memory_space<vmem>>, vector<1x8x128xf32>
    %3 = vector.shape_cast %2 : vector<1x8x128xf32> to vector<8x128xf32>
    %c0_5 = arith.constant 0 : index
    %c0_6 = arith.constant 0 : index
    %4 = vector.load %arg6[%c0_5, %c0_6] : memref<16x8xf32, #tpu.memory_space<vmem>>, vector<16x8xf32>
    %cst = arith.constant dense<0.000000e+00> : vector<16x256xf32>
    %5 = tpu.matmul %4, %1, %cst {dimension_numbers = #tpu.dot_dimension_numbers<[1], [0], [0], [1], [0, 0, 1, 1], [], []>} : vector<16x8xf32>, vector<8x256xf32>, vector<16x256xf32> -> vector<16x256xf32>
    %c0_7 = arith.constant 0 : index
    %c0_8 = arith.constant 0 : index
    %6 = vector.load %arg7[%c0_7, %c0_8] : memref<16x1xf32, #tpu.memory_space<vmem>>, vector<16x1xf32>
    %7 = vector.broadcast %6 : vector<16x1xf32> to vector<16x256xf32>
    %8 = arith.addf %5, %7 : vector<16x256xf32>
    %9 = vector.extract_strided_slice %8 {offsets = [0, 0], sizes = [8, 256], strides = [1, 1]} : vector<16x256xf32> to vector<8x256xf32>
    %10 = vector.extract_strided_slice %8 {offsets = [8, 0], sizes = [8, 256], strides = [1, 1]} : vector<16x256xf32> to vector<8x256xf32>
    %c0_9 = arith.constant 0 : index
    %c0_10 = arith.constant 0 : index
    %11 = vector.load %arg4[%c0_9, %c0_10] : memref<8x8xf32, #tpu.memory_space<vmem>>, vector<8x8xf32>
    %cst_11 = arith.constant dense<0.000000e+00> : vector<8x128xf32>
    %12 = tpu.matmul %11, %3, %cst_11 {dimension_numbers = #tpu.dot_dimension_numbers<[1], [0], [0], [1], [0, 0, 1, 1], [], []>} : vector<8x8xf32>, vector<8x128xf32>, vector<8x128xf32> -> vector<8x128xf32>
    %c0_12 = arith.constant 0 : index
    %c0_13 = arith.constant 0 : index
    %13 = vector.load %arg5[%c0_12, %c0_13] : memref<8x1xf32, #tpu.memory_space<vmem>>, vector<8x1xf32>
    %14 = vector.broadcast %13 : vector<8x1xf32> to vector<8x128xf32>
    %15 = arith.addf %12, %14 : vector<8x128xf32>
    %16 = tpu.transpose %15, [1, 0] : vector<8x128xf32> -> vector<128x8xf32>
    %17 = arith.truncf %16 : vector<128x8xf32> to vector<128x8xbf16>
    %18 = arith.truncf %9 : vector<8x256xf32> to vector<8x256xbf16>
    %cst_14 = arith.constant dense<0.000000e+00> : vector<128x256xf32>
    %19 = tpu.matmul %17, %18, %cst_14 {dimension_numbers = #tpu.dot_dimension_numbers<[1], [0], [0], [1], [0, 0, 1, 1], [], []>} : vector<128x8xbf16>, vector<8x256xbf16>, vector<128x256xf32> -> vector<128x256xf32>
    %cst_15 = arith.constant dense<0xFF800000> : vector<128xf32>
    %20 = vector.multi_reduction <maximumf>, %19, %cst_15 [1] : vector<128x256xf32> to vector<128xf32>
    %21 = vector.shape_cast %20 : vector<128xf32> to vector<128x1xf32>
    %22 = vector.broadcast %21 : vector<128x1xf32> to vector<128x256xf32>
    %23 = arith.subf %19, %22 : vector<128x256xf32>
    %24 = math.exp %23 : vector<128x256xf32>
    %cst_16 = arith.constant dense<0.000000e+00> : vector<128xf32>
    %25 = vector.multi_reduction <add>, %24, %cst_16 [1] : vector<128x256xf32> to vector<128xf32>
    %26 = vector.shape_cast %25 : vector<128xf32> to vector<128x1xf32>
    %27 = tpu.reciprocal %26 {approx = true} : vector<128x1xf32> -> vector<128x1xf32>
    %28 = vector.broadcast %27 : vector<128x1xf32> to vector<128x256xf32>
    %29 = arith.mulf %24, %28 : vector<128x256xf32>
    %30 = arith.truncf %10 : vector<8x256xf32> to vector<8x256xbf16>
    %31 = arith.truncf %29 : vector<128x256xf32> to vector<128x256xbf16>
    %cst_17 = arith.constant dense<0.000000e+00> : vector<8x128xf32>
    %32 = tpu.matmul %30, %31, %cst_17 {dimension_numbers = #tpu.dot_dimension_numbers<[1], [1], [0], [0], [0, 0, 1, 0], [], []>} : vector<8x256xbf16>, vector<128x256xbf16>, vector<8x128xf32> -> vector<8x128xf32>
    %c0_18 = arith.constant 0 : index
    %c0_19 = arith.constant 0 : index
    %c0_20 = arith.constant 0 : index
    %33 = vector.load %arg8[%c0_18, %c0_19, %c0_20] : memref<1x8x128xf32, #tpu.memory_space<vmem>>, vector<1x8x128xf32>
    %34 = vector.shape_cast %33 : vector<1x8x128xf32> to vector<8x128xf32>
    %35 = vector.shape_cast %32 : vector<8x128xf32> to vector<1x8x128xf32>
    tpu.vector_store %arg8[%c0_18, %c0_19, %c0_20], %35 {strides = array<i32>} : memref<1x8x128xf32, #tpu.memory_space<vmem>>, vector<1x8x128xf32>,
    return
  }
  func.func @transform_0(%arg0: i32, %arg1: i32) -> (i32, i32, i32) {
    %c0_i32 = arith.constant 0 : i32
    %c0_i32_0 = arith.constant 0 : i32
    return %arg0, %c0_i32, %arg1 : i32, i32, i32
  }
  func.func @transform_1(%arg0: i32, %arg1: i32) -> (i32, i32, i32) {
    %c0_i32 = arith.constant 0 : i32
    %c0_i32_0 = arith.constant 0 : i32
    %c0_i32_1 = arith.constant 0 : i32
    return %arg0, %c0_i32, %c0_i32_0 : i32, i32, i32
  }
  func.func @transform_2(%arg0: i32, %arg1: i32) -> (i32, i32) {
    %c0_i32 = arith.constant 0 : i32
    %c0_i32_0 = arith.constant 0 : i32
    %c0_i32_1 = arith.constant 0 : i32
    return %c0_i32, %c0_i32_0 : i32, i32
  }
  func.func @transform_3(%arg0: i32, %arg1: i32) -> (i32, i32) {
    %c0_i32 = arith.constant 0 : i32
    %c0_i32_0 = arith.constant 0 : i32
    %c0_i32_1 = arith.constant 0 : i32
    return %c0_i32, %c0_i32_0 : i32, i32
  }
  func.func @transform_4(%arg0: i32, %arg1: i32) -> (i32, i32) {
    %c0_i32 = arith.constant 0 : i32
    %c0_i32_0 = arith.constant 0 : i32
    %c0_i32_1 = arith.constant 0 : i32
    return %c0_i32, %c0_i32_0 : i32, i32
  }
  func.func @transform_5(%arg0: i32, %arg1: i32) -> (i32, i32) {
    %c0_i32 = arith.constant 0 : i32
    %c0_i32_0 = arith.constant 0 : i32
    %c0_i32_1 = arith.constant 0 : i32
    return %c0_i32, %c0_i32_0 : i32, i32
  }
  func.func @transform_6(%arg0: i32, %arg1: i32) -> (i32, i32, i32) {
    %c0_i32 = arith.constant 0 : i32
    %c0_i32_0 = arith.constant 0 : i32
    return %arg0, %c0_i32, %arg1 : i32, i32, i32
  }
}

</mosaic_0001>

<llo_original>
// kernel: sa_attn_core_forward.1
$region0: #{sa_attn_core_forward.1}
  #allocation0 [shape = 'u32[]', space=smem, size = 0x4, offset = 0x4, fixed_abs, tag = 'smem constant byte address 0x4 - core index']
  #allocation1 [shape = 'u32[144,128]{1,0:T(1,128)}', space=vmem, size = 0x12000, scoped, tag = 'internal scratch']
  %s0 = inlined_call_operand.vmem [shape: f32[2,8,256], index: 0, kind: input, shape index: {}, may-alias: {0,1}]
  %s1 = inlined_call_operand.vmem [shape: f32[2,8,256], index: 1, kind: input, shape index: {}, may-alias: {0,1}]
  %s2 = inlined_call_operand.vmem [shape: f32[8,8], index: 2, kind: input, shape index: {}]
  %s3 = inlined_call_operand.vmem [shape: f32[8,1], index: 3, kind: input, shape index: {}]
  %s4 = inlined_call_operand.vmem [shape: f32[16,8], index: 4, kind: input, shape index: {}]
  %s5 = inlined_call_operand.vmem [shape: f32[16,1], index: 5, kind: input, shape index: {}]
  %s6 = inlined_call_operand.vmem [shape: f32[2,8,256], index: 6, kind: output, shape index: {}]
  %s7 = sld [smem:[#allocation0]]
  $region57: #{sa_attn_core_forward.1} parent=0
    _
  %s9 = ssub.s32 1, %s7
  %s10 = scalar_select 0, %s9, %s7
  loop: start=0, step=1, limit=6
  $region2: #{sa_attn_core_forward.1} parent=0 // loop_pre_header
    _
  $region3: #{sa_attn_core_forward.1} parent=0 // loop_header
    %s12 = sphi 0, %s16
    %p13 = scmp.ge.s32.totalorder %s12, 6
    %s19 = sphi 0, %s31
    %s20 = sphi 0, %s27
    %s21 = sphi 0, %s19
    %s22 = sphi 0, %s20
    %s23 = sphi 0, %s21
    %s24 = sphi 0, %s22
    %s36 = sphi 0, %s38
    %s39 = sphi 0, %s36
    %s40 = sphi 0, %s39
    %s56 = sphi 0, %s40
    %s62 = sphi 0, %s64
    %s65 = sphi 0, %s62
    %s66 = sphi 0, %s65
    %s82 = sphi 0, %s66
    %s86 = sphi 0, %s86
    %s88 = sphi 0, %s86
    %s89 = sphi 0, %s88
    %s103 = sphi 0, %s89
    %s107 = sphi 0, %s107
    %s109 = sphi 0, %s107
    %s110 = sphi 0, %s109
    %s124 = sphi 0, %s110
    %s128 = sphi 0, %s128
    %s130 = sphi 0, %s128
    %s131 = sphi 0, %s130
    %s145 = sphi 0, %s131
    %s149 = sphi 0, %s149
    %s151 = sphi 0, %s149
    %s152 = sphi 0, %s151
    %s166 = sphi 0, %s152
    %s174 = sphi 0, %s176
    %s177 = sphi 0, %s174
    %s178 = sphi 0, %s177
    %s194 = sphi 0, %s178
  $region4: #{sa_attn_core_forward.1} parent=0 // loop_header_branch
    %15 = sbr.rel (%p13) target = $region8
  $region5: #{sa_attn_core_forward.1} parent=0 // loop_body
    %s17 = ssub.s32 %s12, 1
    %s18 = ssub.s32 %s12, 2
    %s25 = sadd.s32 1, %s20
    %p26 = scmp.ge.s32.totalorder %s25, 2
    %s27 = scalar_select %p26, 0, %s25
    %s28 = sadd.s32 1, %s19
    %s29 = scalar_select %p26, %s28, %s19
    %p30 = scmp.ge.s32.totalorder %s29, 2
    %s31 = scalar_select %p30, 0, %s29
    %s32 = ssub.s32 %s19, %s31
    %s33 = ssub.s32 %s20, %s27
    %s34 = sor.u32 %s32, %s33
    %p35 = scmp.eq.s32.totalorder %s34, 0
    %s37 = sadd.s32 %s36, 1
    %s38 = scalar_select %p35, %s36, %s37
    %p41 = pneg %p35
    %p42 = scmp.eq.s32.totalorder %s12, 3
    %p43 = por %p41, %p42
    %p44 = scmp.ne.s32.totalorder %s36, %s39
    %p45 = scmp.eq.s32.totalorder %s12, 0
    %p46 = por %p44, %p45
    %p47 = scmp.ne.s32.totalorder %s36, %s39
    %p48 = scmp.eq.s32.totalorder %s17, 3
    %p49 = por %p47, %p48
    %p50 = scmp.ne.s32.totalorder %s39, %s40
    %p51 = scmp.eq.s32.totalorder %s17, 0
    %p52 = por %p50, %p51
    %p53 = scmp.ne.s32.totalorder %s39, %s40
    %p54 = scmp.eq.s32.totalorder %s18, 3
    %p55 = por %p53, %p54
    %p57 = scmp.ne.s32.totalorder %s40, %s56
    %p58 = scmp.eq.s32.totalorder %s18, 0
    %p59 = por %p57, %p58
    %s60 = ssub.s32 %s19, %s31
    %p61 = scmp.eq.s32.totalorder %s60, 0
    %s63 = sadd.s32 %s62, 1
    %s64 = scalar_select %p61, %s62, %s63
    %p67 = pneg %p61
    %p68 = scmp.eq.s32.totalorder %s12, 3
    %p69 = por %p67, %p68
    %p70 = scmp.ne.s32.totalorder %s62, %s65
    %p71 = scmp.eq.s32.totalorder %s12, 0
    %p72 = por %p70, %p71
    %p73 = scmp.ne.s32.totalorder %s62, %s65
    %p74 = scmp.eq.s32.totalorder %s17, 3
    %p75 = por %p73, %p74
    %p76 = scmp.ne.s32.totalorder %s65, %s66
    %p77 = scmp.eq.s32.totalorder %s17, 0
    %p78 = por %p76, %p77
    %p79 = scmp.ne.s32.totalorder %s65, %s66
    %p80 = scmp.eq.s32.totalorder %s18, 3
    %p81 = por %p79, %p80
    %p83 = scmp.ne.s32.totalorder %s66, %s82
    %p84 = scmp.eq.s32.totalorder %s18, 0
    %p85 = por %p83, %p84
    %s87 = sadd.s32 %s86, 1
    %p90 = scmp.eq.s32.totalorder %s12, 3
    %p91 = scmp.ne.s32.totalorder %s86, %s88
    %p92 = scmp.eq.s32.totalorder %s12, 0
    %p93 = por %p91, %p92
    %p94 = scmp.ne.s32.totalorder %s86, %s88
    %p95 = scmp.eq.s32.totalorder %s17, 3
    %p96 = por %p94, %p95
    %p97 = scmp.ne.s32.totalorder %s88, %s89
    %p98 = scmp.eq.s32.totalorder %s17, 0
    %p99 = por %p97, %p98
    %p100 = scmp.ne.s32.totalorder %s88, %s89
    %p101 = scmp.eq.s32.totalorder %s18, 3
    %p102 = por %p100, %p101
    %p104 = scmp.ne.s32.totalorder %s89, %s103
    %p105 = scmp.eq.s32.totalorder %s18, 0
    %p106 = por %p104, %p105
    %s108 = sadd.s32 %s107, 1
    %p111 = scmp.eq.s32.totalorder %s12, 3
    %p112 = scmp.ne.s32.totalorder %s107, %s109
    %p113 = scmp.eq.s32.totalorder %s12, 0
    %p114 = por %p112, %p113
    %p115 = scmp.ne.s32.totalorder %s107, %s109
    %p116 = scmp.eq.s32.totalorder %s17, 3
    %p117 = por %p115, %p116
    %p118 = scmp.ne.s32.totalorder %s109, %s110
    %p119 = scmp.eq.s32.totalorder %s17, 0
    %p120 = por %p118, %p119
    %p121 = scmp.ne.s32.totalorder %s109, %s110
    %p122 = scmp.eq.s32.totalorder %s18, 3
    %p123 = por %p121, %p122
    %p125 = scmp.ne.s32.totalorder %s110, %s124
    %p126 = scmp.eq.s32.totalorder %s18, 0
    %p127 = por %p125, %p126
    %s129 = sadd.s32 %s128, 1
    %p132 = scmp.eq.s32.totalorder %s12, 3
    %p133 = scmp.ne.s32.totalorder %s128, %s130
    %p134 = scmp.eq.s32.totalorder %s12, 0
    %p135 = por %p133, %p134
    %p136 = scmp.ne.s32.totalorder %s128, %s130
    %p137 = scmp.eq.s32.totalorder %s17, 3
    %p138 = por %p136, %p137
    %p139 = scmp.ne.s32.totalorder %s130, %s131
    %p140 = scmp.eq.s32.totalorder %s17, 0
    %p141 = por %p139, %p140
    %p142 = scmp.ne.s32.totalorder %s130, %s131
    %p143 = scmp.eq.s32.totalorder %s18, 3
    %p144 = por %p142, %p143
    %p146 = scmp.ne.s32.totalorder %s131, %s145
    %p147 = scmp.eq.s32.totalorder %s18, 0
    %p148 = por %p146, %p147
    %s150 = sadd.s32 %s149, 1
    %p153 = scmp.eq.s32.totalorder %s12, 3
    %p154 = scmp.ne.s32.totalorder %s149, %s151
    %p155 = scmp.eq.s32.totalorder %s12, 0
    %p156 = por %p154, %p155
    %p157 = scmp.ne.s32.totalorder %s149, %s151
    %p158 = scmp.eq.s32.totalorder %s17, 3
    %p159 = por %p157, %p158
    %p160 = scmp.ne.s32.totalorder %s151, %s152
    %p161 = scmp.eq.s32.totalorder %s17, 0
    %p162 = por %p160, %p161
    %p163 = scmp.ne.s32.totalorder %s151, %s152
    %p164 = scmp.eq.s32.totalorder %s18, 3
    %p165 = por %p163, %p164
    %p167 = scmp.ne.s32.totalorder %s152, %s166
    %p168 = scmp.eq.s32.totalorder %s18, 0
    %p169 = por %p167, %p168
    %s170 = ssub.s32 %s19, %s31
    %s171 = ssub.s32 %s20, %s27
    %s172 = sor.u32 %s170, %s171
    %p173 = scmp.eq.s32.totalorder %s172, 0
    %s175 = sadd.s32 %s174, 1
    %s176 = scalar_select %p173, %s174, %s175
    %p179 = pneg %p173
    %p180 = scmp.eq.s32.totalorder %s12, 3
    %p181 = por %p179, %p180
    %p182 = scmp.ne.s32.totalorder %s174, %s177
    %p183 = scmp.eq.s32.totalorder %s12, 0
    %p184 = por %p182, %p183
    %p185 = scmp.ne.s32.totalorder %s174, %s177
    %p186 = scmp.eq.s32.totalorder %s17, 3
    %p187 = por %p185, %p186
    %p188 = scmp.ne.s32.totalorder %s177, %s178
    %p189 = scmp.eq.s32.totalorder %s17, 0
    %p190 = por %p188, %p189
    %p191 = scmp.ne.s32.totalorder %s177, %s178
    %p192 = scmp.eq.s32.totalorder %s18, 3
    %p193 = por %p191, %p192
    %p195 = scmp.ne.s32.totalorder %s178, %s194
    %p196 = scmp.eq.s32.totalorder %s18, 0
    %p197 = por %p195, %p196
    %p198 = scmp.le.s32.totalorder 1, %s12
    %p199 = scmp.lt.s32.totalorder %s12, 5
    %p200 = pnand %p198, %p199
    %p201 = pneg %p200
    // Predicated region
    $region9: #{sa_attn_core_forward.1} parent=5 // pred_check
      _
    $region10: #{sa_attn_core_forward.1} parent=5 // pred_check_branch
      %203 = sbr.rel (%p200) target = $region12
    $region11: #{sa_attn_core_forward.1} parent=5 // pred_region
      %s204 = ssub.s32 %s12, 1
      // Predicated region
      $region13: #{sa_attn_core_forward.1} parent=11 // pred_check
        %p205 = pneg %p99
      $region14: #{sa_attn_core_forward.1} parent=11 // pred_check_branch
        %207 = sbr.rel (%p205) target = $region16
      $region15: #{sa_attn_core_forward.1} parent=11 // pred_region
        _
      $region16: #{sa_attn_core_forward.1} parent=11 // pred_fallthru
        _
      // Predicated region
      $region17: #{sa_attn_core_forward.1} parent=11 // pred_check
        %p208 = pneg %p120
      $region18: #{sa_attn_core_forward.1} parent=11 // pred_check_branch
        %210 = sbr.rel (%p208) target = $region20
      $region19: #{sa_attn_core_forward.1} parent=11 // pred_region
        _
      $region20: #{sa_attn_core_forward.1} parent=11 // pred_fallthru
        _
      // Predicated region
      $region21: #{sa_attn_core_forward.1} parent=11 // pred_check
        %p211 = pneg %p141
      $region22: #{sa_attn_core_forward.1} parent=11 // pred_check_branch
        %213 = sbr.rel (%p211) target = $region24
      $region23: #{sa_attn_core_forward.1} parent=11 // pred_region
        _
      $region24: #{sa_attn_core_forward.1} parent=11 // pred_fallthru
        _
      // Predicated region
      $region25: #{sa_attn_core_forward.1} parent=11 // pred_check
        %p214 = pneg %p162
      $region26: #{sa_attn_core_forward.1} parent=11 // pred_check_branch
        %216 = sbr.rel (%p214) target = $region28
      $region27: #{sa_attn_core_forward.1} parent=11 // pred_region
        _
      $region28: #{sa_attn_core_forward.1} parent=11 // pred_fallthru
        _
    $region12: #{sa_attn_core_forward.1} parent=5 // pred_fallthru
      _
    %p217 = scmp.lt.s32.totalorder %s12, 4
    // Predicated region
    $region29: #{sa_attn_core_forward.1} parent=5 // pred_check
      %p218 = pneg %p217
    $region30: #{sa_attn_core_forward.1} parent=5 // pred_check_branch
      %220 = sbr.rel (%p218) target = $region32
    $region31: #{sa_attn_core_forward.1} parent=5 // pred_region
      // Predicated region
      $region33: #{sa_attn_core_forward.1} parent=31 // pred_check
        %p221 = pneg %p46
      $region34: #{sa_attn_core_forward.1} parent=31 // pred_check_branch
        %223 = sbr.rel (%p221) target = $region36
      $region35: #{sa_attn_core_forward.1} parent=31 // pred_region
        %p224 = scmp.lt.s32.totalorder %s19, 1
        %s225 = scalar_select %p224, %s19, 1
        %p226 = scmp.lt.s32.totalorder %s20, 1
        %s227 = scalar_select %p226, %s20, 1
        %s228 = smul.addr %s225, 2
        %s229 = sadd.s32 %s227, %s228
        %s230 = smul.addr %s229, 8
        %s231 = scalar_lea.vmem %s0, %s230
      $region36: #{sa_attn_core_forward.1} parent=31 // pred_fallthru
        _
      // Predicated region
      $region37: #{sa_attn_core_forward.1} parent=31 // pred_check
        %p232 = pneg %p72
      $region38: #{sa_attn_core_forward.1} parent=31 // pred_check_branch
        %234 = sbr.rel (%p232) target = $region40
      $region39: #{sa_attn_core_forward.1} parent=31 // pred_region
        %p235 = scmp.lt.s32.totalorder %s19, 1
        %s236 = scalar_select %p235, %s19, 1
        %s237 = smul.addr %s236, 2
        %s238 = smul.addr %s237, 8
        %s239 = scalar_lea.vmem %s1, %s238
      $region40: #{sa_attn_core_forward.1} parent=31 // pred_fallthru
        _
    $region32: #{sa_attn_core_forward.1} parent=5 // pred_fallthru
      _
    %p240 = scmp.le.s32.totalorder 1, %s12
    %p241 = scmp.lt.s32.totalorder %s12, 5
    %p242 = pnand %p240, %p241
    %p243 = pneg %p242
    // Predicated region
    $region41: #{sa_attn_core_forward.1} parent=5 // pred_check
      _
    $region42: #{sa_attn_core_forward.1} parent=5 // pred_check_branch
      %245 = sbr.rel (%p242) target = $region44
    $region43: #{sa_attn_core_forward.1} parent=5 // pred_region
      %s246 = ssub.s32 %s12, 1
      %p247 = scmp.lt.s32.totalorder %s21, 1
      %s248 = scalar_select %p247, %s21, 1
      %p249 = scmp.lt.s32.totalorder %s22, 1
      %s250 = scalar_select %p249, %s22, 1
      %s251 = smul.addr %s248, 2
      %s252 = sadd.s32 %s250, %s251
      %s253 = smul.addr %s252, 8
      %s254 = scalar_lea.vmem %s0, %s253
      %p255 = pneg %p52
      %p256 = pneg %p49
      %p257 = scmp.lt.s32.totalorder %s21, 1
      %s258 = scalar_select %p257, %s21, 1
      %s259 = smul.addr %s258, 2
      %s260 = smul.addr %s259, 8
      %s261 = scalar_lea.vmem %s1, %s260
      %p262 = pneg %p78
      %p263 = pneg %p75
      %p264 = pneg %p99
      %p265 = pneg %p96
      %p266 = pneg %p120
      %p267 = pneg %p117
      %p268 = pneg %p141
      %p269 = pneg %p138
      %p270 = pneg %p162
      %p271 = pneg %p159
      %p272 = pneg %p190
      %p273 = pneg %p187
      %p274 = scmp.lt.s32.totalorder %s21, 1
      %s275 = scalar_select %p274, %s21, 1
      %p276 = scmp.lt.s32.totalorder %s22, 1
      %s277 = scalar_select %p276, %s22, 1
      %s278 = smul.addr %s275, 2
      %s279 = sadd.s32 %s277, %s278
      %s280 = smul.addr %s279, 8
      %s281 = scalar_lea.vmem %s6, %s280
      %p282 = scmp.lt.s32.totalorder %s21, 1
      %s283 = scalar_select %p282, %s21, 1
      %p284 = scmp.lt.s32.totalorder %s22, 1
      %s285 = scalar_select %p284, %s22, 1
      %s286 = smul.addr %s283, 2
      %s287 = sadd.s32 %s285, %s286
      %s288 = smul.addr %s287, 8
      %s289 = scalar_lea.vmem %s0, %s288
      %p290 = scmp.lt.s32.totalorder %s21, 1
      %s291 = scalar_select %p290, %s21, 1
      %s292 = smul.addr %s291, 2
      %s293 = smul.addr %s292, 8
      %s294 = scalar_lea.vmem %s1, %s293
      %p295 = scmp.lt.s32.totalorder %s21, 1
      %s296 = scalar_select %p295, %s21, 1
      %p297 = scmp.lt.s32.totalorder %s22, 1
      %s298 = scalar_select %p297, %s22, 1
      %s299 = smul.addr %s296, 2
      %s300 = sadd.s32 %s298, %s299
      %s301 = smul.addr %s300, 8
      %s302 = scalar_lea.vmem %s6, %s301
      %v304 = vld [vmem:[%s294] sm:$0xff]
      %v305 = vld [vmem:[%s294 + $0x8] sm:$0xff]
      %v306 = vld [vmem:[%s289] sm:$0xff]
      %v307 = vld [vmem:[%s4] sm:$0xff]
      %v308 = vld [vmem:[%s4 + $0x8] sm:$0xff]
      %v309 = vld [vmem:[%s5] sm:$0xff]
      %v310 = vld [vmem:[%s5 + $0x8] sm:$0xff]
      %312 = vset.pattern.permute.xlu0 0
      %313 = vperm.xlu0 %312, %v309
      %v314 = vpop.permute.xlu0 %313
      %317 = vset.pattern.permute.xlu0 0
      %318 = vperm.xlu0 %317, %v310
      %v319 = vpop.permute.xlu0 %318
      %vm321 = vcmask 64512
      %v323 = vsel %vm321, %v307, 0
      %v326 = vsel %vm321, %v308, 0
      %328 = vmatprep.subr.mxu0 %v305
      %329 = vmatpush1.msra.mxu0 %v304
      %330 = vmatprep.subr.mxu0 0.0
      %331 = vmatpush1.msra.mxu0 0.0
      %332 = vmatprep.subr.mxu0 0.0
      %333 = vmatpush1.msra.mxu0 0.0
      %334 = vmatprep.subr.mxu0 0.0
      %335 = vmatpush1.msra.mxu0 0.0
      %336 = vmatprep.subr.mxu0 0.0
      %337 = vmatpush1.msra.mxu0 0.0
      %338 = vmatprep.subr.mxu0 0.0
      %339 = vmatpush1.msra.mxu0 0.0
      %340 = vmatprep.subr.mxu0 0.0
      %341 = vmatpush1.msra.mxu0 0.0
      %342 = vmatprep.subr.mxu0 0.0
      %343 = vmatpush1.msra.mxu0 0.0
      %344 = vmatprep.subr.mxu0 0.0
      %345 = vmatpush1.msra.mxu0 0.0
      %346 = vmatprep.subr.mxu0 0.0
      %347 = vmatpush1.msra.mxu0 0.0
      %348 = vmatprep.subr.mxu0 0.0
      %349 = vmatpush1.msra.mxu0 0.0
      %350 = vmatprep.subr.mxu0 0.0
      %351 = vmatpush1.msra.mxu0 0.0
      %352 = vmatprep.subr.mxu0 0.0
      %353 = vmatpush1.msra.mxu0 0.0
      %354 = vmatprep.subr.mxu0 0.0
      %355 = vmatpush1.msra.mxu0 0.0
      %356 = vmatprep.subr.mxu0 0.0
      %357 = vmatpush1.msra.mxu0 0.0
      %358 = vmatprep.subr.mxu0 0.0
      %359 = vmatpush1.msra.mxu0 0.0
      %360 = vmatprep.subr.mxu0 0.0
      %361 = vmatpush1.msra.mxu0 0.0
      %362 = vmatprep.subr.mxu0 0.0
      %363 = vmatpush1.msra.mxu0 0.0
      %364 = vmatprep.subr.mxu0 0.0
      %365 = vmatpush1.msra.mxu0 0.0
      %366 = vmatprep.subr.mxu0 0.0
      %367 = vmatpush1.msra.mxu0 0.0
      %368 = vmatprep.subr.mxu0 0.0
      %369 = vmatpush1.msra.mxu0 0.0
      %370 = vmatprep.subr.mxu0 0.0
      %371 = vmatpush1.msra.mxu0 0.0
      %372 = vmatprep.subr.mxu0 0.0
      %373 = vmatpush1.msra.mxu0 0.0
      %374 = vmatprep.subr.mxu0 0.0
      %375 = vmatpush1.msra.mxu0 0.0
      %376 = vmatprep.subr.mxu0 0.0
      %377 = vmatpush1.msra.mxu0 0.0
      %378 = vmatprep.subr.mxu0 0.0
      %379 = vmatpush1.msra.mxu0 0.0
      %380 = vmatprep.subr.mxu0 0.0
      %381 = vmatpush1.msra.mxu0 0.0
      %382 = vmatprep.subr.mxu0 0.0
      %383 = vmatpush1.msra.mxu0 0.0
      %384 = vmatprep.subr.mxu0 0.0
      %385 = vmatpush1.msra.mxu0 0.0
      %386 = vmatprep.subr.mxu0 0.0
      %387 = vmatpush1.msra.mxu0 0.0
      %388 = vmatprep.subr.mxu0 0.0
      %389 = vmatpush1.msra.mxu0 0.0
      %390 = vmatprep.subr.mxu0 0.0
      %391 = vmatpush1.msra.mxu0 0.0
      %392 = vmatprep.mubr.f32.mxu0 0.0
      %393 = vmatmul.mubr.f32.gmra.mrb[0].mxu0 %v323
      %v394 = vpop.f32.mrb[0].mxu0
      %v395 = vadd.f32 %v314, %v394
      %v396 = vpop.f32.mrb[0].mxu0
      %v397 = vadd.f32 %v314, %v396
      %398 = vmatprep.mubr.f32.mxu0 0.0
      %399 = vmatmul.mubr.f32.gmra.mrb[0].mxu0 %v326
      %v400 = vpop.f32.mrb[0].mxu0
      %v401 = vadd.f32 %v319, %v400
      %v402 = vpop.f32.mrb[0].mxu0
      %v403 = vadd.f32 %v319, %v402
      %404 = vdwg.mxu0
      %v405 = vld [vmem:[%s2] sm:$0xff]
      %v406 = vld [vmem:[%s3] sm:$0xff]
      %408 = vset.pattern.permute.xlu0 0
      %409 = vperm.xlu0 %408, %v406
      %v410 = vpop.permute.xlu0 %409
      %v413 = vsel %vm321, %v405, 0
      %415 = vmatprep.subr.mxu0 0.0
      %416 = vmatpush1.msra.mxu0 %v306
      %417 = vmatprep.subr.mxu0 0.0
      %418 = vmatpush1.msra.mxu0 0.0
      %419 = vmatprep.subr.mxu0 0.0
      %420 = vmatpush1.msra.mxu0 0.0
      %421 = vmatprep.subr.mxu0 0.0
      %422 = vmatpush1.msra.mxu0 0.0
      %423 = vmatprep.subr.mxu0 0.0
      %424 = vmatpush1.msra.mxu0 0.0
      %425 = vmatprep.subr.mxu0 0.0
      %426 = vmatpush1.msra.mxu0 0.0
      %427 = vmatprep.subr.mxu0 0.0
      %428 = vmatpush1.msra.mxu0 0.0
      %429 = vmatprep.subr.mxu0 0.0
      %430 = vmatpush1.msra.mxu0 0.0
      %431 = vmatprep.subr.mxu0 0.0
      %432 = vmatpush1.msra.mxu0 0.0
      %433 = vmatprep.subr.mxu0 0.0
      %434 = vmatpush1.msra.mxu0 0.0
      %435 = vmatprep.subr.mxu0 0.0
      %436 = vmatpush1.msra.mxu0 0.0
      %437 = vmatprep.subr.mxu0 0.0
      %438 = vmatpush1.msra.mxu0 0.0
      %439 = vmatprep.subr.mxu0 0.0
      %440 = vmatpush1.msra.mxu0 0.0
      %441 = vmatprep.subr.mxu0 0.0
      %442 = vmatpush1.msra.mxu0 0.0
      %443 = vmatprep.subr.mxu0 0.0
      %444 = vmatpush1.msra.mxu0 0.0
      %445 = vmatprep.subr.mxu0 0.0
      %446 = vmatpush1.msra.mxu0 0.0
      %447 = vmatprep.subr.mxu0 0.0
      %448 = vmatpush1.msra.mxu0 0.0
      %449 = vmatprep.subr.mxu0 0.0
      %450 = vmatpush1.msra.mxu0 0.0
      %451 = vmatprep.subr.mxu0 0.0
      %452 = vmatpush1.msra.mxu0 0.0
      %453 = vmatprep.subr.mxu0 0.0
      %454 = vmatpush1.msra.mxu0 0.0
      %455 = vmatprep.subr.mxu0 0.0
      %456 = vmatpush1.msra.mxu0 0.0
      %457 = vmatprep.subr.mxu0 0.0
      %458 = vmatpush1.msra.mxu0 0.0
      %459 = vmatprep.subr.mxu0 0.0
      %460 = vmatpush1.msra.mxu0 0.0
      %461 = vmatprep.subr.mxu0 0.0
      %462 = vmatpush1.msra.mxu0 0.0
      %463 = vmatprep.subr.mxu0 0.0
      %464 = vmatpush1.msra.mxu0 0.0
      %465 = vmatprep.subr.mxu0 0.0
      %466 = vmatpush1.msra.mxu0 0.0
      %467 = vmatprep.subr.mxu0 0.0
      %468 = vmatpush1.msra.mxu0 0.0
      %469 = vmatprep.subr.mxu0 0.0
      %470 = vmatpush1.msra.mxu0 0.0
      %471 = vmatprep.subr.mxu0 0.0
      %472 = vmatpush1.msra.mxu0 0.0
      %473 = vmatprep.subr.mxu0 0.0
      %474 = vmatpush1.msra.mxu0 0.0
      %475 = vmatprep.subr.mxu0 0.0
      %476 = vmatpush1.msra.mxu0 0.0
      %477 = vmatprep.subr.mxu0 0.0
      %478 = vmatpush1.msra.mxu0 0.0
      %479 = vmatprep.mubr.f32.mxu0 0.0
      %480 = vmatmul.mubr.f32.gmra.mrb[0].mxu0 %v413
      %v481 = vpop.f32.mrb[0].mxu0
      %v482 = vadd.f32 %v410, %v481
      %v483 = vpop.f32.mrb[0].mxu0
      %484 = vdwg.mxu0
      %485 = vxpose.xlu0.b32.start [1/16] %v482, 128
      %486 = vxpose.xlu0.b32.cont [2/16] 0.0, 128
      %487 = vxpose.xlu0.b32.cont [3/16] 0.0, 128
      %488 = vxpose.xlu0.b32.cont [4/16] 0.0, 128
      %489 = vxpose.xlu0.b32.cont [5/16] 0.0, 128
      %490 = vxpose.xlu0.b32.cont [6/16] 0.0, 128
      %491 = vxpose.xlu0.b32.cont [7/16] 0.0, 128
      %492 = vxpose.xlu0.b32.cont [8/16] 0.0, 128
      %493 = vxpose.xlu0.b32.cont [9/16] 0.0, 128
      %494 = vxpose.xlu0.b32.cont [10/16] 0.0, 128
      %495 = vxpose.xlu0.b32.cont [11/16] 0.0, 128
      %496 = vxpose.xlu0.b32.cont [12/16] 0.0, 128
      %497 = vxpose.xlu0.b32.cont [13/16] 0.0, 128
      %498 = vxpose.xlu0.b32.cont [14/16] 0.0, 128
      %499 = vxpose.xlu0.b32.cont [15/16] 0.0, 128
      %500 = vxpose.xlu0.b32.end [16/16] 0.0, 128
      %v501 = vpop.trf.xlu0
      %v502 = vpop.trf.xlu0
      %v503 = vpop.trf.xlu0
      %v504 = vpop.trf.xlu0
      %v505 = vpop.trf.xlu0
      %v506 = vpop.trf.xlu0
      %v507 = vpop.trf.xlu0
      %v508 = vpop.trf.xlu0
      %v509 = vpop.trf.xlu0
      %v510 = vpop.trf.xlu0
      %v511 = vpop.trf.xlu0
      %v512 = vpop.trf.xlu0
      %v513 = vpop.trf.xlu0
      %v514 = vpop.trf.xlu0
      %v515 = vpop.trf.xlu0
      %v516 = vpop.trf.xlu0
      %v517 = vpack.c.bf16 %v502, %v501
      %v518 = vpack.c.bf16 %v504, %v503
      %v519 = vpack.c.bf16 %v506, %v505
      %v520 = vpack.c.bf16 %v508, %v507
      %v521 = vpack.c.bf16 %v510, %v509
      %v522 = vpack.c.bf16 %v512, %v511
      %v523 = vpack.c.bf16 %v514, %v513
      %v524 = vpack.c.bf16 %v516, %v515
      %v525 = vpack.c.bf16 %v395, %v395
      %v526 = vpack.c.bf16 %v397, %v397
      %v528 = vsel %vm321, %v517, 0
      %v531 = vsel %vm321, %v518, 0
      %v534 = vsel %vm321, %v519, 0
      %v537 = vsel %vm321, %v520, 0
      %v540 = vsel %vm321, %v521, 0
      %v543 = vsel %vm321, %v522, 0
      %v546 = vsel %vm321, %v523, 0
      %v549 = vsel %vm321, %v524, 0
      %vm551 = vcmask 1043456
      %v553 = vsel %vm551, %v525, 0
      %v556 = vsel %vm551, %v526, 0
      %558 = vmatprep.subr.bf16.mxu0 %v556
      %559 = vmatpush1.bf16.msra.mxu0 %v553
      %560 = vmatprep.subr.bf16.mxu0 0
      %561 = vmatpush1.bf16.msra.mxu0 0
      %562 = vmatprep.subr.bf16.mxu0 0
      %563 = vmatpush1.bf16.msra.mxu0 0
      %564 = vmatprep.subr.bf16.mxu0 0
      %565 = vmatpush1.bf16.msra.mxu0 0
      %566 = vmatprep.subr.bf16.mxu0 0
      %567 = vmatpush1.bf16.msra.mxu0 0
      %568 = vmatprep.subr.bf16.mxu0 0
      %569 = vmatpush1.bf16.msra.mxu0 0
      %570 = vmatprep.subr.bf16.mxu0 0
      %571 = vmatpush1.bf16.msra.mxu0 0
      %572 = vmatprep.subr.bf16.mxu0 0
      %573 = vmatpush1.bf16.msra.mxu0 0
      %574 = vmatprep.subr.bf16.mxu0 0
      %575 = vmatpush1.bf16.msra.mxu0 0
      %576 = vmatprep.subr.bf16.mxu0 0
      %577 = vmatpush1.bf16.msra.mxu0 0
      %578 = vmatprep.subr.bf16.mxu0 0
      %579 = vmatpush1.bf16.msra.mxu0 0
      %580 = vmatprep.subr.bf16.mxu0 0
      %581 = vmatpush1.bf16.msra.mxu0 0
      %582 = vmatprep.subr.bf16.mxu0 0
      %583 = vmatpush1.bf16.msra.mxu0 0
      %584 = vmatprep.subr.bf16.mxu0 0
      %585 = vmatpush1.bf16.msra.mxu0 0
      %586 = vmatprep.subr.bf16.mxu0 0
      %587 = vmatpush1.bf16.msra.mxu0 0
      %588 = vmatprep.subr.bf16.mxu0 0
      %589 = vmatpush1.bf16.msra.mxu0 0
      %590 = vmatprep.mubr.bf16.mxu0 0
      %591 = vmatmul.mubr.bf16.gmra.mrb[0].mxu0 %v528
      %v592 = vpop.f32.mrb[0].mxu0
      %v593 = vadd.f32 0.0, %v592
      %v594 = vpop.f32.mrb[0].mxu0
      %v595 = vadd.f32 0.0, %v594
      %v596 = vpop.f32.mrb[0].mxu0
      %v597 = vadd.f32 0.0, %v596
      %v598 = vpop.f32.mrb[0].mxu0
      %v599 = vadd.f32 0.0, %v598
      %600 = vmatprep.mubr.bf16.mxu0 0
      %601 = vmatmul.mubr.bf16.gmra.mrb[0].mxu0 %v531
      %v602 = vpop.f32.mrb[0].mxu0
      %v603 = vadd.f32 0.0, %v602
      %v604 = vpop.f32.mrb[0].mxu0
      %v605 = vadd.f32 0.0, %v604
      %v606 = vpop.f32.mrb[0].mxu0
      %v607 = vadd.f32 0.0, %v606
      %v608 = vpop.f32.mrb[0].mxu0
      %v609 = vadd.f32 0.0, %v608
      %610 = vmatprep.mubr.bf16.mxu0 0
      %611 = vmatmul.mubr.bf16.gmra.mrb[0].mxu0 %v534
      %v612 = vpop.f32.mrb[0].mxu0
      %v613 = vadd.f32 0.0, %v612
      %v614 = vpop.f32.mrb[0].mxu0
      %v615 = vadd.f32 0.0, %v614
      %v616 = vpop.f32.mrb[0].mxu0
      %v617 = vadd.f32 0.0, %v616
      %v618 = vpop.f32.mrb[0].mxu0
      %v619 = vadd.f32 0.0, %v618
      %620 = vmatprep.mubr.bf16.mxu0 0
      %621 = vmatmul.mubr.bf16.gmra.mrb[0].mxu0 %v537
      %v622 = vpop.f32.mrb[0].mxu0
      %v623 = vadd.f32 0.0, %v622
      %v624 = vpop.f32.mrb[0].mxu0
      %v625 = vadd.f32 0.0, %v624
      %v626 = vpop.f32.mrb[0].mxu0
      %v627 = vadd.f32 0.0, %v626
      %v628 = vpop.f32.mrb[0].mxu0
      %v629 = vadd.f32 0.0, %v628
      %630 = vmatprep.mubr.bf16.mxu0 0
      %631 = vmatmul.mubr.bf16.gmra.mrb[0].mxu0 %v540
      %v632 = vpop.f32.mrb[0].mxu0
      %v633 = vadd.f32 0.0, %v632
      %v634 = vpop.f32.mrb[0].mxu0
      %v635 = vadd.f32 0.0, %v634
      %v636 = vpop.f32.mrb[0].mxu0
      %v637 = vadd.f32 0.0, %v636
      %v638 = vpop.f32.mrb[0].mxu0
      %v639 = vadd.f32 0.0, %v638
      %640 = vmatprep.mubr.bf16.mxu0 0
      %641 = vmatmul.mubr.bf16.gmra.mrb[0].mxu0 %v543
      %v642 = vpop.f32.mrb[0].mxu0
      %v643 = vadd.f32 0.0, %v642
      %v644 = vpop.f32.mrb[0].mxu0
      %v645 = vadd.f32 0.0, %v644
      %v646 = vpop.f32.mrb[0].mxu0
      %v647 = vadd.f32 0.0, %v646
      %v648 = vpop.f32.mrb[0].mxu0
      %v649 = vadd.f32 0.0, %v648
      %650 = vmatprep.mubr.bf16.mxu0 0
      %651 = vmatmul.mubr.bf16.gmra.mrb[0].mxu0 %v546
      %v652 = vpop.f32.mrb[0].mxu0
      %v653 = vadd.f32 0.0, %v652
      %v654 = vpop.f32.mrb[0].mxu0
      %v655 = vadd.f32 0.0, %v654
      %v656 = vpop.f32.mrb[0].mxu0
      %v657 = vadd.f32 0.0, %v656
      %v658 = vpop.f32.mrb[0].mxu0
      %v659 = vadd.f32 0.0, %v658
      %660 = vmatprep.mubr.bf16.mxu0 0
      %661 = vmatmul.mubr.bf16.gmra.mrb[0].mxu0 %v549
      %v662 = vpop.f32.mrb[0].mxu0
      %v663 = vadd.f32 0.0, %v662
      %v664 = vpop.f32.mrb[0].mxu0
      %v665 = vadd.f32 0.0, %v664
      %v666 = vpop.f32.mrb[0].mxu0
      %v667 = vadd.f32 0.0, %v666
      %v668 = vpop.f32.mrb[0].mxu0
      %v669 = vadd.f32 0.0, %v668
      %670 = vdwg.mxu0
      %v671 = vmax.f32 %v593, %v595
      %672 = vmax.xlane.f32.xlu0 %v671
      %v673 = vpop.xlane.xlu0 %672
      %v674 = vmax.f32 %v597, %v599
      %675 = vmax.xlane.f32.xlu0 %v674
      %v676 = vpop.xlane.xlu0 %675
      %v677 = vmax.f32 %v603, %v605
      %678 = vmax.xlane.f32.xlu0 %v677
      %v679 = vpop.xlane.xlu0 %678
      %v680 = vmax.f32 %v607, %v609
      %681 = vmax.xlane.f32.xlu0 %v680
      %v682 = vpop.xlane.xlu0 %681
      %v683 = vmax.f32 %v613, %v615
      %684 = vmax.xlane.f32.xlu0 %v683
      %v685 = vpop.xlane.xlu0 %684
      %v686 = vmax.f32 %v617, %v619
      %687 = vmax.xlane.f32.xlu0 %v686
      %v688 = vpop.xlane.xlu0 %687
      %v689 = vmax.f32 %v623, %v625
      %690 = vmax.xlane.f32.xlu0 %v689
      %v691 = vpop.xlane.xlu0 %690
      %v692 = vmax.f32 %v627, %v629
      %693 = vmax.xlane.f32.xlu0 %v692
      %v694 = vpop.xlane.xlu0 %693
      %v695 = vmax.f32 %v633, %v635
      %696 = vmax.xlane.f32.xlu0 %v695
      %v697 = vpop.xlane.xlu0 %696
      %v698 = vmax.f32 %v637, %v639
      %699 = vmax.xlane.f32.xlu0 %v698
      %v700 = vpop.xlane.xlu0 %699
      %v701 = vmax.f32 %v643, %v645
      %702 = vmax.xlane.f32.xlu0 %v701
      %v703 = vpop.xlane.xlu0 %702
      %v704 = vmax.f32 %v647, %v649
      %705 = vmax.xlane.f32.xlu0 %v704
      %v706 = vpop.xlane.xlu0 %705
      %v707 = vmax.f32 %v653, %v655
      %708 = vmax.xlane.f32.xlu0 %v707
      %v709 = vpop.xlane.xlu0 %708
      %v710 = vmax.f32 %v657, %v659
      %711 = vmax.xlane.f32.xlu0 %v710
      %v712 = vpop.xlane.xlu0 %711
      %v713 = vmax.f32 %v663, %v665
      %714 = vmax.xlane.f32.xlu0 %v713
      %v715 = vpop.xlane.xlu0 %714
      %v716 = vmax.f32 %v667, %v669
      %717 = vmax.xlane.f32.xlu0 %v716
      %v718 = vpop.xlane.xlu0 %717
      %v719 = vsub.f32 %v593, %v673
      %v720 = vsub.f32 %v595, %v673
      %v721 = vsub.f32 %v597, %v676
      %v722 = vsub.f32 %v599, %v676
      %v723 = vsub.f32 %v603, %v679
      %v724 = vsub.f32 %v605, %v679
      %v725 = vsub.f32 %v607, %v682
      %v726 = vsub.f32 %v609, %v682
      %v727 = vsub.f32 %v613, %v685
      %v728 = vsub.f32 %v615, %v685
      %v729 = vsub.f32 %v617, %v688
      %v730 = vsub.f32 %v619, %v688
      %v731 = vsub.f32 %v623, %v691
      %v732 = vsub.f32 %v625, %v691
      %v733 = vsub.f32 %v627, %v694
      %v734 = vsub.f32 %v629, %v694
      %v735 = vsub.f32 %v633, %v697
      %v736 = vsub.f32 %v635, %v697
      %v737 = vsub.f32 %v637, %v700
      %v738 = vsub.f32 %v639, %v700
      %v739 = vsub.f32 %v643, %v703
      %v740 = vsub.f32 %v645, %v703
      %v741 = vsub.f32 %v647, %v706
      %v742 = vsub.f32 %v649, %v706
      %v743 = vsub.f32 %v653, %v709
      %v744 = vsub.f32 %v655, %v709
      %v745 = vsub.f32 %v657, %v712
      %v746 = vsub.f32 %v659, %v712
      %v747 = vsub.f32 %v663, %v715
      %v748 = vsub.f32 %v665, %v715
      %v749 = vsub.f32 %v667, %v718
      %v750 = vsub.f32 %v669, %v718
      %v751 = vmul.f32 %v719, 1.442695
      %v752 = vpow.pop %v751
      %v753 = vmul.f32 %v720, 1.442695
      %v754 = vpow.pop %v753
      %v755 = vmul.f32 %v721, 1.442695
      %v756 = vpow.pop %v755
      %v757 = vmul.f32 %v722, 1.442695
      %v758 = vpow.pop %v757
      %v759 = vmul.f32 %v723, 1.442695
      %v760 = vpow.pop %v759
      %v761 = vmul.f32 %v724, 1.442695
      %v762 = vpow.pop %v761
      %v763 = vmul.f32 %v725, 1.442695
      %v764 = vpow.pop %v763
      %v765 = vmul.f32 %v726, 1.442695
      %v766 = vpow.pop %v765
      %v767 = vmul.f32 %v727, 1.442695
      %v768 = vpow.pop %v767
      %v769 = vmul.f32 %v728, 1.442695
      %v770 = vpow.pop %v769
      %v771 = vmul.f32 %v729, 1.442695
      %v772 = vpow.pop %v771
      %v773 = vmul.f32 %v730, 1.442695
      %v774 = vpow.pop %v773
      %v775 = vmul.f32 %v731, 1.442695
      %v776 = vpow.pop %v775
      %v777 = vmul.f32 %v732, 1.442695
      %v778 = vpow.pop %v777
      %v779 = vmul.f32 %v733, 1.442695
      %v780 = vpow.pop %v779
      %v781 = vmul.f32 %v734, 1.442695
      %v782 = vpow.pop %v781
      %v783 = vmul.f32 %v735, 1.442695
      %v784 = vpow.pop %v783
      %v785 = vmul.f32 %v736, 1.442695
      %v786 = vpow.pop %v785
      %v787 = vmul.f32 %v737, 1.442695
      %v788 = vpow.pop %v787
      %v789 = vmul.f32 %v738, 1.442695
      %v790 = vpow.pop %v789
      %v791 = vmul.f32 %v739, 1.442695
      %v792 = vpow.pop %v791
      %v793 = vmul.f32 %v740, 1.442695
      %v794 = vpow.pop %v793
      %v795 = vmul.f32 %v741, 1.442695
      %v796 = vpow.pop %v795
      %v797 = vmul.f32 %v742, 1.442695
      %v798 = vpow.pop %v797
      %v799 = vmul.f32 %v743, 1.442695
      %v800 = vpow.pop %v799
      %v801 = vmul.f32 %v744, 1.442695
      %v802 = vpow.pop %v801
      %v803 = vmul.f32 %v745, 1.442695
      %v804 = vpow.pop %v803
      %v805 = vmul.f32 %v746, 1.442695
      %v806 = vpow.pop %v805
      %v807 = vmul.f32 %v747, 1.442695
      %v808 = vpow.pop %v807
      %v809 = vmul.f32 %v748, 1.442695
      %v810 = vpow.pop %v809
      %v811 = vmul.f32 %v749, 1.442695
      %v812 = vpow.pop %v811
      %v813 = vmul.f32 %v750, 1.442695
      %v814 = vpow.pop %v813
      %v815 = vadd.f32 %v752, %v754
      %816 = vadd.xlane.f32.xlu0 %v815
      %v817 = vpop.xlane.xlu0 %816
      %v818 = vadd.f32 %v756, %v758
      %819 = vadd.xlane.f32.xlu0 %v818
      %v820 = vpop.xlane.xlu0 %819
      %v821 = vadd.f32 %v760, %v762
      %822 = vadd.xlane.f32.xlu0 %v821
      %v823 = vpop.xlane.xlu0 %822
      %v824 = vadd.f32 %v764, %v766
      %825 = vadd.xlane.f32.xlu0 %v824
      %v826 = vpop.xlane.xlu0 %825
      %v827 = vadd.f32 %v768, %v770
      %828 = vadd.xlane.f32.xlu0 %v827
      %v829 = vpop.xlane.xlu0 %828
      %v830 = vadd.f32 %v772, %v774
      %831 = vadd.xlane.f32.xlu0 %v830
      %v832 = vpop.xlane.xlu0 %831
      %v833 = vadd.f32 %v776, %v778
      %834 = vadd.xlane.f32.xlu0 %v833
      %v835 = vpop.xlane.xlu0 %834
      %v836 = vadd.f32 %v780, %v782
      %837 = vadd.xlane.f32.xlu0 %v836
      %v838 = vpop.xlane.xlu0 %837
      %v839 = vadd.f32 %v784, %v786
      %840 = vadd.xlane.f32.xlu0 %v839
      %v841 = vpop.xlane.xlu0 %840
      %v842 = vadd.f32 %v788, %v790
      %843 = vadd.xlane.f32.xlu0 %v842
      %v844 = vpop.xlane.xlu0 %843
      %v845 = vadd.f32 %v792, %v794
      %846 = vadd.xlane.f32.xlu0 %v845
      %v847 = vpop.xlane.xlu0 %846
      %v848 = vadd.f32 %v796, %v798
      %849 = vadd.xlane.f32.xlu0 %v848
      %v850 = vpop.xlane.xlu0 %849
      %v851 = vadd.f32 %v800, %v802
      %852 = vadd.xlane.f32.xlu0 %v851
      %v853 = vpop.xlane.xlu0 %852
      %v854 = vadd.f32 %v804, %v806
      %855 = vadd.xlane.f32.xlu0 %v854
      %v856 = vpop.xlane.xlu0 %855
      %v857 = vadd.f32 %v808, %v810
      %858 = vadd.xlane.f32.xlu0 %v857
      %v859 = vpop.xlane.xlu0 %858
      %v860 = vadd.f32 %v812, %v814
      %861 = vadd.xlane.f32.xlu0 %v860
      %v862 = vpop.xlane.xlu0 %861
      %v863 = vrcp.pop %v817
      %v864 = vrcp.pop %v820
      %v865 = vrcp.pop %v823
      %v866 = vrcp.pop %v826
      %v867 = vrcp.pop %v829
      %v868 = vrcp.pop %v832
      %v869 = vrcp.pop %v835
      %v870 = vrcp.pop %v838
      %v871 = vrcp.pop %v841
      %v872 = vrcp.pop %v844
      %v873 = vrcp.pop %v847
      %v874 = vrcp.pop %v850
      %v875 = vrcp.pop %v853
      %v876 = vrcp.pop %v856
      %v877 = vrcp.pop %v859
      %v878 = vrcp.pop %v862
      %v879 = vmul.f32 %v752, %v863
      %v880 = vmul.f32 %v754, %v863
      %v881 = vmul.f32 %v756, %v864
      %v882 = vmul.f32 %v758, %v864
      %v883 = vmul.f32 %v760, %v865
      %v884 = vmul.f32 %v762, %v865
      %v885 = vmul.f32 %v764, %v866
      %v886 = vmul.f32 %v766, %v866
      %v887 = vmul.f32 %v768, %v867
      %v888 = vmul.f32 %v770, %v867
      %v889 = vmul.f32 %v772, %v868
      %v890 = vmul.f32 %v774, %v868
      %v891 = vmul.f32 %v776, %v869
      %v892 = vmul.f32 %v778, %v869
      %v893 = vmul.f32 %v780, %v870
      %v894 = vmul.f32 %v782, %v870
      %v895 = vmul.f32 %v784, %v871
      %v896 = vmul.f32 %v786, %v871
      %v897 = vmul.f32 %v788, %v872
      %v898 = vmul.f32 %v790, %v872
      %v899 = vmul.f32 %v792, %v873
      %v900 = vmul.f32 %v794, %v873
      %v901 = vmul.f32 %v796, %v874
      %v902 = vmul.f32 %v798, %v874
      %v903 = vmul.f32 %v800, %v875
      %v904 = vmul.f32 %v802, %v875
      %v905 = vmul.f32 %v804, %v876
      %v906 = vmul.f32 %v806, %v876
      %v907 = vmul.f32 %v808, %v877
      %v908 = vmul.f32 %v810, %v877
      %v909 = vmul.f32 %v812, %v878
      %v910 = vmul.f32 %v814, %v878
      %v911 = vpack.c.bf16 %v401, %v401
      %v912 = vpack.c.bf16 %v403, %v403
      %v913 = vpack.c.bf16 %v881, %v879
      %v914 = vpack.c.bf16 %v882, %v880
      %v915 = vpack.c.bf16 %v885, %v883
      %v916 = vpack.c.bf16 %v886, %v884
      %v917 = vpack.c.bf16 %v889, %v887
      %v918 = vpack.c.bf16 %v890, %v888
      %v919 = vpack.c.bf16 %v893, %v891
      %v920 = vpack.c.bf16 %v894, %v892
      %v921 = vpack.c.bf16 %v897, %v895
      %v922 = vpack.c.bf16 %v898, %v896
      %v923 = vpack.c.bf16 %v901, %v899
      %v924 = vpack.c.bf16 %v902, %v900
      %v925 = vpack.c.bf16 %v905, %v903
      %v926 = vpack.c.bf16 %v906, %v904
      %v927 = vpack.c.bf16 %v909, %v907
      %v928 = vpack.c.bf16 %v910, %v908
      %929 = vmatprep.subr.bf16.mxu0 %v914
      %930 = vmatpush1.bf16.xpose.msra.mxu0 %v913
      %931 = vmatprep.subr.bf16.mxu0 %v916
      %932 = vmatpush1.bf16.xpose.msra.mxu0 %v915
      %933 = vmatprep.subr.bf16.mxu0 %v918
      %934 = vmatpush1.bf16.xpose.msra.mxu0 %v917
      %935 = vmatprep.subr.bf16.mxu0 %v920
      %936 = vmatpush1.bf16.xpose.msra.mxu0 %v919
      %937 = vmatprep.subr.bf16.mxu0 %v922
      %938 = vmatpush1.bf16.xpose.msra.mxu0 %v921
      %939 = vmatprep.subr.bf16.mxu0 %v924
      %940 = vmatpush1.bf16.xpose.msra.mxu0 %v923
      %941 = vmatprep.subr.bf16.mxu0 %v926
      %942 = vmatpush1.bf16.xpose.msra.mxu0 %v925
      %943 = vmatprep.subr.bf16.mxu0 %v928
      %944 = vmatpush1.bf16.xpose.msra.mxu0 %v927
      %945 = vmatprep.subr.bf16.mxu0 0
      %946 = vmatpush1.bf16.xpose.msra.mxu0 0
      %947 = vmatprep.subr.bf16.mxu0 0
      %948 = vmatpush1.bf16.xpose.msra.mxu0 0
      %949 = vmatprep.subr.bf16.mxu0 0
      %950 = vmatpush1.bf16.xpose.msra.mxu0 0
      %951 = vmatprep.subr.bf16.mxu0 0
      %952 = vmatpush1.bf16.xpose.msra.mxu0 0
      %953 = vmatprep.subr.bf16.mxu0 0
      %954 = vmatpush1.bf16.xpose.msra.mxu0 0
      %955 = vmatprep.subr.bf16.mxu0 0
      %956 = vmatpush1.bf16.xpose.msra.mxu0 0
      %957 = vmatprep.subr.bf16.mxu0 0
      %958 = vmatpush1.bf16.xpose.msra.mxu0 0
      %959 = vmatprep.subr.bf16.mxu0 0
      %960 = vmatpush1.bf16.xpose.msra.mxu0 0
      %961 = vmatprep.mubr.bf16.mxu0 %v912
      %962 = vmatmul.mubr.bf16.gmra.mrb[0].mxu0 %v911
      %v963 = vpop.f32.mrb[0].mxu0
      %v964 = vadd.f32 0.0, %v963
      %v965 = vpop.f32.mrb[0].mxu0
      %v966 = vpop.f32.mrb[0].mxu0
      %v967 = vpop.f32.mrb[0].mxu0
      %968 = vdwg.mxu0
      %969 = vst [vmem:[%s302] sm:$0xff] %v964
      %p970 = scmp.lt.s32.totalorder %s21, 1
      %s971 = scalar_select %p970, %s21, 1
      %p972 = scmp.lt.s32.totalorder %s22, 1
      %s973 = scalar_select %p972, %s22, 1
      %s974 = smul.addr %s971, 2
      %s975 = sadd.s32 %s973, %s974
      %s976 = smul.addr %s975, 8
      %s977 = scalar_lea.vmem %s6, %s976
      // Predicated region
      $region45: #{sa_attn_core_forward.1} parent=43 // pred_check
        %p978 = pneg %p187
      $region46: #{sa_attn_core_forward.1} parent=43 // pred_check_branch
        %980 = sbr.rel (%p978) target = $region48
      $region47: #{sa_attn_core_forward.1} parent=43 // pred_region
        _
      $region48: #{sa_attn_core_forward.1} parent=43 // pred_fallthru
        _
    $region44: #{sa_attn_core_forward.1} parent=5 // pred_fallthru
      _
    %p981 = scmp.le.s32.totalorder 2, %s12
    // Predicated region
    $region49: #{sa_attn_core_forward.1} parent=5 // pred_check
      %p982 = pneg %p981
    $region50: #{sa_attn_core_forward.1} parent=5 // pred_check_branch
      %984 = sbr.rel (%p982) target = $region52
    $region51: #{sa_attn_core_forward.1} parent=5 // pred_region
      %s985 = ssub.s32 %s12, 2
      // Predicated region
      $region53: #{sa_attn_core_forward.1} parent=51 // pred_check
        %p986 = pneg %p193
      $region54: #{sa_attn_core_forward.1} parent=51 // pred_check_branch
        %988 = sbr.rel (%p986) target = $region56
      $region55: #{sa_attn_core_forward.1} parent=51 // pred_region
        %p989 = scmp.lt.s32.totalorder %s23, 1
        %s990 = scalar_select %p989, %s23, 1
        %p991 = scmp.lt.s32.totalorder %s24, 1
        %s992 = scalar_select %p991, %s24, 1
        %s993 = smul.addr %s990, 2
        %s994 = sadd.s32 %s992, %s993
        %s995 = smul.addr %s994, 8
        %s996 = scalar_lea.vmem %s6, %s995
      $region56: #{sa_attn_core_forward.1} parent=51 // pred_fallthru
        _
    $region52: #{sa_attn_core_forward.1} parent=5 // pred_fallthru
      _
  $region6: #{sa_attn_core_forward.1} parent=0 // loop_footer
    %s16 = sadd.s32 1, %s12
  $region7: #{sa_attn_core_forward.1} parent=0 // loop_footer_branch
    %11 = sbr.rel target = $region3
  $region8: #{sa_attn_core_forward.1} parent=0 // loop_exit
    _

</llo_original>
